<compile_context>
chip_gen: v6e
topology: v6e:2x2x1
jax: 0.10.0
libtpu: 0.0.40
codegen_flags: <defaults>
</compile_context>

<pallas_src>
import jax
import jax.numpy as jnp
from jax.experimental import pallas as pl
from jax.experimental.pallas import tpu as pltpu

LANE = 128
SUBLANE = 8
NB_PAD = 8  # sublane-aligned width of the one-hot block (>= n_batches for typical models)


def _round_up(x, m):
    return ((x + m - 1) // m) * m


def _discriminator_kernel(x_ref, oh_ref, w0x_ref, w0b_ref, b0_ref,
                          w1_ref, b1_ref, w2_ref, b2_ref, o_ref):
    """3-layer MLP hot path: bf16 MXU matmuls with f32 accumulation, all operands in VMEM."""
    # linear_0: x @ W0_x + one_hot(b) @ W0_b + b0 ; act_0 ; dropout_0 == identity (eval)
    h = (jnp.dot(x_ref[...].astype(jnp.bfloat16), w0x_ref[...],
                 preferred_element_type=jnp.float32)
         + jnp.dot(oh_ref[...], w0b_ref[...],
                   preferred_element_type=jnp.float32)
         + b0_ref[...])
    h = jnp.maximum(h, 0.2 * h)                     # LeakyReLU(0.2)

    # linear_1 + act_1 ; dropout_1 == identity (eval)
    h = jnp.dot(h.astype(jnp.bfloat16), w1_ref[...],
                preferred_element_type=jnp.float32) + b1_ref[...]
    h = jnp.maximum(h, 0.2 * h)

    # pred
    o = jnp.dot(h.astype(jnp.bfloat16), w2_ref[...],
                preferred_element_type=jnp.float32) + b2_ref[...]
    o_ref[...] = o.astype(o_ref.dtype)


def prepare_params(params, in_features, n_batches):
    """Pad / cast parameters ONCE (callers should cache the result across forward calls).

    nn.Linear weights are stored transposed as (in, out). linear_0's weight rows for the
    one-hot batch columns are split off into W0_b so the one_hot+concat never touches x.
    Feature dims are zero-padded to lane multiples (128); padded columns stay exactly zero
    through the whole network, so slicing is unnecessary on the hidden dims.
    """
    w0, b0, w1, b1, w2, b2 = params
    D = in_features
    H = w0.shape[1]
    O = w2.shape[1]
    Hp = _round_up(H, LANE)
    bf16, f32 = jnp.bfloat16, jnp.float32

    w0x = jnp.zeros((D, Hp), bf16).at[:, :H].set(w0[:D].astype(bf16))
    w0b = jnp.zeros((NB_PAD, Hp), bf16)
    if n_batches:
        w0b = w0b.at[:n_batches, :H].set(w0[D:D + n_batches].astype(bf16))
    b0p = jnp.zeros((1, Hp), f32).at[:, :H].set(b0.reshape(1, H).astype(f32))
    w1p = jnp.zeros((Hp, Hp), bf16).at[:H, :H].set(w1.astype(bf16))
    b1p = jnp.zeros((1, Hp), f32).at[:, :H].set(b1.reshape(1, H).astype(f32))
    w2p = jnp.zeros((Hp, O), bf16).at[:H, :].set(w2.astype(bf16))
    b2p = b2.reshape(1, O).astype(f32)
    return (w0x, w0b, b0p, w1p, b1p, w2p, b2p)


def _vmem_footprint_bytes(tile_rows, D, Hp, O):
    """Approximate resident VMEM (double-buffered tiles + weights + activation temporaries)."""
    def tile(rows, cols, itemsize):
        return _round_up(rows, SUBLANE) * _round_up(cols, LANE) * itemsize

    step_io = tile(tile_rows, D, 4) + tile(tile_rows, NB_PAD, 2) + tile(tile_rows, O, 4)
    weights = (tile(D, Hp, 2) + tile(NB_PAD, Hp, 2) + tile(Hp, Hp, 2) + tile(Hp, O, 2)
               + 2 * tile(1, Hp, 4) + tile(1, O, 4))
    acts = 2 * tile(tile_rows, Hp, 4)
    return 2 * step_io + 2 * weights + acts


def discriminator_forward(x, b, prepared, *, n_batches, tile_rows=None):
    """Run the Pallas MLP. `prepared` comes from prepare_params (pad/cast done once)."""
    w0x, w0b, b0p, w1p, b1p, w2p, b2p = prepared
    N, D = x.shape
    assert w0x.shape[0] == D
    Hp = w1p.shape[0]
    O = w2p.shape[1]

    # Tiny one-hot block (N x 8 bf16). Labels >= n_batches never occur; padded W0_b rows are 0.
    if n_batches:
        lbl = jax.lax.broadcasted_iota(jnp.int32, (N, NB_PAD), 1)
        oh = (lbl == b.astype(jnp.int32)[:, None]).astype(jnp.bfloat16)
    else:
        oh = jnp.zeros((N, NB_PAD), jnp.bfloat16)

    # Row tiling: cap at 256 rows and aim for >= 2 grid steps (pipelining; lets v7x's two
    # TensorCores split the "parallel" grid axis). Partial last blocks are handled by Pallas
    # (masked output writes), so N need not be padded or copied.
    if tile_rows is None:
        tile_rows = max(SUBLANE, min(256, _round_up(pl.cdiv(N, 2), SUBLANE)))
    grid = (pl.cdiv(N, tile_rows),)

    vmem_limit = int(min(48 * 1024 * 1024,
                         max(8 * 1024 * 1024,
                             2 * _vmem_footprint_bytes(tile_rows, D, Hp, O))))

    def const_spec(shape):
        # weights / biases fully resident for every grid step
        return pl.BlockSpec(shape, lambda i: (0,) * len(shape))

    out = pl.pallas_call(
        _discriminator_kernel,
        out_shape=jax.ShapeDtypeStruct((N, O), jnp.float32),
        grid=grid,
        in_specs=[
            pl.BlockSpec((tile_rows, D), lambda i: (i, 0)),        # x rows (f32, unpadded)
            pl.BlockSpec((tile_rows, NB_PAD), lambda i: (i, 0)),   # one_hot(b) rows (bf16)
            const_spec(w0x.shape),                                 # W0_x  (D, Hp)
            const_spec(w0b.shape),                                 # W0_b  (8, Hp)
            const_spec(b0p.shape),                                 # b0    (1, Hp)
            const_spec(w1p.shape),                                 # W1    (Hp, Hp)
            const_spec(b1p.shape),                                 # b1    (1, Hp)
            const_spec(w2p.shape),                                 # W2    (Hp, O)
            const_spec(b2p.shape),                                 # b2    (1, O)
        ],
        out_specs=pl.BlockSpec((tile_rows, O), lambda i: (i, 0)),  # logits (unpadded last dim)
        compiler_params=pltpu.CompilerParams(
            dimension_semantics=("parallel",),
            vmem_limit_bytes=vmem_limit),
    )(x, oh, w0x, w0b, b0p, w1p, b1p, w2p, b2p)

    return out


def init_params(key, in_features, out_features, n_batches, h_dim):
    """Deterministic synthetic parameters (nn.Linear weights stored transposed as (in, out))."""
    d_in = in_features + n_batches
    ks = jax.random.split(key, 6)
    w0 = jax.random.normal(ks[0], (d_in, h_dim), jnp.float32) * 0.1
    b0 = jax.random.normal(ks[1], (1, h_dim), jnp.float32) * 0.1
    w1 = jax.random.normal(ks[2], (h_dim, h_dim), jnp.float32) * 0.1
    b1 = jax.random.normal(ks[3], (1, h_dim), jnp.float32) * 0.1
    w2 = jax.random.normal(ks[4], (h_dim, out_features), jnp.float32) * 0.1
    b2 = jax.random.normal(ks[5], (1, out_features), jnp.float32) * 0.1
    return (w0, b0, w1, b1, w2, b2)


def reference_forward(x, b, params, n_batches):
    """Pure-JAX f32 reference for correctness checking."""
    if n_batches:
        x = jnp.concatenate([x, jax.nn.one_hot(b, n_batches, dtype=x.dtype)], axis=1)
    w0, b0, w1, b1, w2, b2 = params
    h = x @ w0 + b0
    h = jnp.where(h > 0, h, 0.2 * h)
    h = h @ w1 + b1
    h = jnp.where(h > 0, h, 0.2 * h)
    return h @ w2 + b2


if __name__ == "__main__":
    # small shapes consistent with the module
    N = 16            # batch size (rows)
    in_features = 30
    n_batches = 2     # -> concatenated feature dim = 32
    h_dim = 32
    out_features = 8

    key = jax.random.PRNGKey(0)
    kx, kb, kp = jax.random.split(key, 3)
    x = jax.random.normal(kx, (N, in_features), jnp.float32)
    b = jax.random.randint(kb, (N,), 0, n_batches, jnp.int32)
    params = init_params(kp, in_features, out_features, n_batches, h_dim)

    # Parameter padding / bf16 casting done once (cache this across forward calls).
    prepared = prepare_params(params, in_features, n_batches)

    out = discriminator_forward(x, b, prepared, n_batches=n_batches)
    out = jax.block_until_ready(out)

    ref = reference_forward(x, b, params, n_batches)
    assert out.shape == (N, out_features)
    # bf16 MXU operands -> loosened tolerance vs the f32 reference
    assert jnp.allclose(out, ref, atol=2e-2, rtol=2e-2), "mismatch vs reference"

    print("KERNEL_OK")
</pallas_src>

<mosaic_0001>
module attributes {stable_mosaic.version = 11 : i64} {
  func.func @_discriminator_kernel(%arg0: i32, %arg1: memref<8x30xf32, #tpu.memory_space<vmem>>, %arg2: memref<8x8xbf16, #tpu.memory_space<vmem>>, %arg3: memref<30x128xbf16, #tpu.memory_space<vmem>>, %arg4: memref<8x128xbf16, #tpu.memory_space<vmem>>, %arg5: memref<1x128xf32, #tpu.memory_space<vmem>>, %arg6: memref<128x128xbf16, #tpu.memory_space<vmem>>, %arg7: memref<1x128xf32, #tpu.memory_space<vmem>>, %arg8: memref<128x8xbf16, #tpu.memory_space<vmem>>, %arg9: memref<1x8xf32, #tpu.memory_space<vmem>>, %arg10: memref<8x8xf32, #tpu.memory_space<vmem>>) attributes {dimension_semantics = [#tpu.dimension_semantics<parallel>], iteration_bounds = array<i64: 2>, scalar_prefetch = 0 : i64, scratch_operands = 0 : i64, tpu.core_type = #tpu.core_type<tc>, window_params = [{transform_indices = @transform_0, window_bounds = array<i64: 8, 30>}, {transform_indices = @transform_1, window_bounds = array<i64: 8, 8>}, {pipeline_mode = #tpu.pipeline_mode<synchronous>, transform_indices = @transform_2, window_bounds = array<i64: 30, 128>}, {pipeline_mode = #tpu.pipeline_mode<synchronous>, transform_indices = @transform_3, window_bounds = array<i64: 8, 128>}, {pipeline_mode = #tpu.pipeline_mode<synchronous>, transform_indices = @transform_4, window_bounds = array<i64: 1, 128>}, {pipeline_mode = #tpu.pipeline_mode<synchronous>, transform_indices = @transform_5, window_bounds = array<i64: 128, 128>}, {pipeline_mode = #tpu.pipeline_mode<synchronous>, transform_indices = @transform_6, window_bounds = array<i64: 1, 128>}, {pipeline_mode = #tpu.pipeline_mode<synchronous>, transform_indices = @transform_7, window_bounds = array<i64: 128, 8>}, {pipeline_mode = #tpu.pipeline_mode<synchronous>, transform_indices = @transform_8, window_bounds = array<i64: 1, 8>}, {transform_indices = @transform_9, window_bounds = array<i64: 8, 8>}]} {
    %c0 = arith.constant 0 : index
    %c0_0 = arith.constant 0 : index
    %0 = vector.load %arg1[%c0, %c0_0] : memref<8x30xf32, #tpu.memory_space<vmem>>, vector<8x30xf32>
    %1 = arith.truncf %0 : vector<8x30xf32> to vector<8x30xbf16>
    %c0_1 = arith.constant 0 : index
    %c0_2 = arith.constant 0 : index
    %2 = vector.load %arg3[%c0_1, %c0_2] : memref<30x128xbf16, #tpu.memory_space<vmem>>, vector<30x128xbf16>
    %cst = arith.constant dense<0.000000e+00> : vector<8x128xf32>
    %3 = tpu.matmul %1, %2, %cst {dimension_numbers = #tpu.dot_dimension_numbers<[1], [0], [0], [1], [0, 0, 1, 1], [], []>} : vector<8x30xbf16>, vector<30x128xbf16>, vector<8x128xf32> -> vector<8x128xf32>
    %c0_3 = arith.constant 0 : index
    %c0_4 = arith.constant 0 : index
    %4 = vector.load %arg2[%c0_3, %c0_4] : memref<8x8xbf16, #tpu.memory_space<vmem>>, vector<8x8xbf16>
    %c0_5 = arith.constant 0 : index
    %c0_6 = arith.constant 0 : index
    %5 = vector.load %arg4[%c0_5, %c0_6] : memref<8x128xbf16, #tpu.memory_space<vmem>>, vector<8x128xbf16>
    %cst_7 = arith.constant dense<0.000000e+00> : vector<8x128xf32>
    %6 = tpu.matmul %4, %5, %cst_7 {dimension_numbers = #tpu.dot_dimension_numbers<[1], [0], [0], [1], [0, 0, 1, 1], [], []>} : vector<8x8xbf16>, vector<8x128xbf16>, vector<8x128xf32> -> vector<8x128xf32>
    %7 = arith.addf %3, %6 : vector<8x128xf32>
    %c0_8 = arith.constant 0 : index
    %c0_9 = arith.constant 0 : index
    %8 = vector.load %arg5[%c0_8, %c0_9] : memref<1x128xf32, #tpu.memory_space<vmem>>, vector<1x128xf32>
    %9 = vector.broadcast %8 : vector<1x128xf32> to vector<8x128xf32>
    %10 = arith.addf %7, %9 : vector<8x128xf32>
    %cst_10 = arith.constant 2.000000e-01 : f32
    %11 = vector.broadcast %cst_10 : f32 to vector<8x128xf32>
    %12 = arith.mulf %11, %10 : vector<8x128xf32>
    %13 = arith.maximumf %10, %12 : vector<8x128xf32>
    %14 = arith.truncf %13 : vector<8x128xf32> to vector<8x128xbf16>
    %c0_11 = arith.constant 0 : index
    %c0_12 = arith.constant 0 : index
    %15 = vector.load %arg6[%c0_11, %c0_12] : memref<128x128xbf16, #tpu.memory_space<vmem>>, vector<128x128xbf16>
    %cst_13 = arith.constant dense<0.000000e+00> : vector<8x128xf32>
    %16 = tpu.matmul %14, %15, %cst_13 {dimension_numbers = #tpu.dot_dimension_numbers<[1], [0], [0], [1], [0, 0, 1, 1], [], []>} : vector<8x128xbf16>, vector<128x128xbf16>, vector<8x128xf32> -> vector<8x128xf32>
    %c0_14 = arith.constant 0 : index
    %c0_15 = arith.constant 0 : index
    %17 = vector.load %arg7[%c0_14, %c0_15] : memref<1x128xf32, #tpu.memory_space<vmem>>, vector<1x128xf32>
    %18 = vector.broadcast %17 : vector<1x128xf32> to vector<8x128xf32>
    %19 = arith.addf %16, %18 : vector<8x128xf32>
    %cst_16 = arith.constant 2.000000e-01 : f32
    %20 = vector.broadcast %cst_16 : f32 to vector<8x128xf32>
    %21 = arith.mulf %20, %19 : vector<8x128xf32>
    %22 = arith.maximumf %19, %21 : vector<8x128xf32>
    %23 = arith.truncf %22 : vector<8x128xf32> to vector<8x128xbf16>
    %c0_17 = arith.constant 0 : index
    %c0_18 = arith.constant 0 : index
    %24 = vector.load %arg8[%c0_17, %c0_18] : memref<128x8xbf16, #tpu.memory_space<vmem>>, vector<128x8xbf16>
    %cst_19 = arith.constant dense<0.000000e+00> : vector<8x8xf32>
    %25 = tpu.matmul %23, %24, %cst_19 {dimension_numbers = #tpu.dot_dimension_numbers<[1], [0], [0], [1], [0, 0, 1, 1], [], []>} : vector<8x128xbf16>, vector<128x8xbf16>, vector<8x8xf32> -> vector<8x8xf32>
    %c0_20 = arith.constant 0 : index
    %c0_21 = arith.constant 0 : index
    %26 = vector.load %arg9[%c0_20, %c0_21] : memref<1x8xf32, #tpu.memory_space<vmem>>, vector<1x8xf32>
    %27 = vector.broadcast %26 : vector<1x8xf32> to vector<8x8xf32>
    %28 = arith.addf %25, %27 : vector<8x8xf32>
    %c0_22 = arith.constant 0 : index
    %c0_23 = arith.constant 0 : index
    %29 = vector.load %arg10[%c0_22, %c0_23] : memref<8x8xf32, #tpu.memory_space<vmem>>, vector<8x8xf32>
    tpu.vector_store %arg10[%c0_22, %c0_23], %28 {strides = array<i32>} : memref<8x8xf32, #tpu.memory_space<vmem>>, vector<8x8xf32>,
    return
  }
  func.func @transform_0(%arg0: i32) -> (i32, i32) {
    %c0_i32 = arith.constant 0 : i32
    %c0_i32_0 = arith.constant 0 : i32
    return %arg0, %c0_i32 : i32, i32
  }
  func.func @transform_1(%arg0: i32) -> (i32, i32) {
    %c0_i32 = arith.constant 0 : i32
    %c0_i32_0 = arith.constant 0 : i32
    return %arg0, %c0_i32 : i32, i32
  }
  func.func @transform_2(%arg0: i32) -> (i32, i32) {
    %c0_i32 = arith.constant 0 : i32
    %c0_i32_0 = arith.constant 0 : i32
    %c0_i32_1 = arith.constant 0 : i32
    return %c0_i32, %c0_i32_0 : i32, i32
  }
  func.func @transform_3(%arg0: i32) -> (i32, i32) {
    %c0_i32 = arith.constant 0 : i32
    %c0_i32_0 = arith.constant 0 : i32
    %c0_i32_1 = arith.constant 0 : i32
    return %c0_i32, %c0_i32_0 : i32, i32
  }
  func.func @transform_4(%arg0: i32) -> (i32, i32) {
    %c0_i32 = arith.constant 0 : i32
    %c0_i32_0 = arith.constant 0 : i32
    %c0_i32_1 = arith.constant 0 : i32
    return %c0_i32, %c0_i32_0 : i32, i32
  }
  func.func @transform_5(%arg0: i32) -> (i32, i32) {
    %c0_i32 = arith.constant 0 : i32
    %c0_i32_0 = arith.constant 0 : i32
    %c0_i32_1 = arith.constant 0 : i32
    return %c0_i32, %c0_i32_0 : i32, i32
  }
  func.func @transform_6(%arg0: i32) -> (i32, i32) {
    %c0_i32 = arith.constant 0 : i32
    %c0_i32_0 = arith.constant 0 : i32
    %c0_i32_1 = arith.constant 0 : i32
    return %c0_i32, %c0_i32_0 : i32, i32
  }
  func.func @transform_7(%arg0: i32) -> (i32, i32) {
    %c0_i32 = arith.constant 0 : i32
    %c0_i32_0 = arith.constant 0 : i32
    %c0_i32_1 = arith.constant 0 : i32
    return %c0_i32, %c0_i32_0 : i32, i32
  }
  func.func @transform_8(%arg0: i32) -> (i32, i32) {
    %c0_i32 = arith.constant 0 : i32
    %c0_i32_0 = arith.constant 0 : i32
    %c0_i32_1 = arith.constant 0 : i32
    return %c0_i32, %c0_i32_0 : i32, i32
  }
  func.func @transform_9(%arg0: i32) -> (i32, i32) {
    %c0_i32 = arith.constant 0 : i32
    %c0_i32_0 = arith.constant 0 : i32
    return %arg0, %c0_i32 : i32, i32
  }
}

</mosaic_0001>

<llo_original>
// kernel: tpu_custom_call.1
$region0: #{tpu_custom_call.1}
  #allocation0 [shape = 'u32[]', space=smem, size = 0x4, offset = 0x4, fixed_abs, tag = 'smem constant byte address 0x4 - core index']
  #allocation1 [shape = 'u32[144,128]{1,0:T(1,128)}', space=vmem, size = 0x12000, scoped, tag = 'internal scratch']
  %s0 = inlined_call_operand.vmem [shape: f32[16,30], index: 0, kind: input, shape index: {}]
  %s1 = inlined_call_operand.vmem [shape: bf16[16,8], index: 1, kind: input, shape index: {}]
  %s2 = inlined_call_operand.hbm [shape: bf16[30,128], index: 2, kind: input, shape index: {}]
  %s3 = inlined_call_operand.vmem [shape: bf16[8,128], index: 3, kind: input, shape index: {}]
  %s4 = inlined_call_operand.vmem [shape: f32[1,128], index: 4, kind: input, shape index: {}]
  %s5 = inlined_call_operand.vmem [shape: bf16[128,128], index: 5, kind: input, shape index: {}]
  %s6 = inlined_call_operand.vmem [shape: f32[1,128], index: 6, kind: input, shape index: {}]
  %s7 = inlined_call_operand.vmem [shape: bf16[128,8], index: 7, kind: input, shape index: {}]
  %s8 = inlined_call_operand.vmem [shape: f32[1,8], index: 8, kind: input, shape index: {}]
  %s9 = inlined_call_operand.vmem [shape: f32[16,8], index: 9, kind: output, shape index: {}]
  %s10 = sld [smem:[#allocation0]]
  $region73: #{tpu_custom_call.1} parent=0
    _
  %s12 = ssub.s32 1, %s10
  %s13 = scalar_select 0, %s12, %s10
  $region1: #{tpu_custom_call.1} parent=0
    #allocation2 [shape = 'u8[8192]{0}', space=vmem, size = 0x2000, scoped, tag = 'input window, operand 2, single buffered']
    #allocation3 [shape = 's32[2]{0}', space=sflag, size = 0x8, scoped, tag = 'scoped memory for tpu_custom_call.1']
    %14 = vsyncpa [#allocation3], 0
    loop: start=0, step=1, limit=4
    $region2: #{tpu_custom_call.1} parent=1 // loop_pre_header
      _
    $region3: #{tpu_custom_call.1} parent=1 // loop_header
      %s16 = sphi 0, %s20
      %p17 = scmp.ge.s32.totalorder %s16, 4
      %s26 = sphi 0, %s28
      %s29 = sphi 0, %s26
      %s30 = sphi 0, %s29
      %s46 = sphi 0, %s30
      %s52 = sphi 0, %s54
      %s55 = sphi 0, %s52
      %s56 = sphi 0, %s55
      %s72 = sphi 0, %s56
      %s76 = sphi 0, %s76
      %s78 = sphi 0, %s76
      %s79 = sphi 0, %s78
      %s93 = sphi 0, %s79
      %s97 = sphi 0, %s97
      %s99 = sphi 0, %s97
      %s100 = sphi 0, %s99
      %s114 = sphi 0, %s100
      %s118 = sphi 0, %s118
      %s120 = sphi 0, %s118
      %s121 = sphi 0, %s120
      %s135 = sphi 0, %s121
      %s139 = sphi 0, %s139
      %s141 = sphi 0, %s139
      %s142 = sphi 0, %s141
      %s156 = sphi 0, %s142
      %s160 = sphi 0, %s160
      %s162 = sphi 0, %s160
      %s163 = sphi 0, %s162
      %s177 = sphi 0, %s163
      %s181 = sphi 0, %s181
      %s183 = sphi 0, %s181
      %s184 = sphi 0, %s183
      %s198 = sphi 0, %s184
      %s202 = sphi 0, %s202
      %s204 = sphi 0, %s202
      %s205 = sphi 0, %s204
      %s219 = sphi 0, %s205
      %s225 = sphi 0, %s227
      %s228 = sphi 0, %s225
      %s229 = sphi 0, %s228
      %s245 = sphi 0, %s229
    $region4: #{tpu_custom_call.1} parent=1 // loop_header_branch
      %19 = sbr.rel (%p17) target = $region8
    $region5: #{tpu_custom_call.1} parent=1 // loop_body
      %s21 = ssub.s32 %s16, 1
      %s22 = ssub.s32 %s16, 2
      %s23 = sadd.s32 %s16, 1
      %s24 = ssub.s32 %s16, %s23
      %p25 = scmp.eq.s32.totalorder %s24, 0
      %s27 = sadd.s32 %s26, 1
      %s28 = scalar_select %p25, %s26, %s27
      %p31 = pneg %p25
      %p32 = scmp.eq.s32.totalorder %s16, 1
      %p33 = por %p31, %p32
      %p34 = scmp.ne.s32.totalorder %s26, %s29
      %p35 = scmp.eq.s32.totalorder %s16, 0
      %p36 = por %p34, %p35
      %p37 = scmp.ne.s32.totalorder %s26, %s29
      %p38 = scmp.eq.s32.totalorder %s21, 1
      %p39 = por %p37, %p38
      %p40 = scmp.ne.s32.totalorder %s29, %s30
      %p41 = scmp.eq.s32.totalorder %s21, 0
      %p42 = por %p40, %p41
      %p43 = scmp.ne.s32.totalorder %s29, %s30
      %p44 = scmp.eq.s32.totalorder %s22, 1
      %p45 = por %p43, %p44
      %p47 = scmp.ne.s32.totalorder %s30, %s46
      %p48 = scmp.eq.s32.totalorder %s22, 0
      %p49 = por %p47, %p48
      %s50 = ssub.s32 %s16, %s23
      %p51 = scmp.eq.s32.totalorder %s50, 0
      %s53 = sadd.s32 %s52, 1
      %s54 = scalar_select %p51, %s52, %s53
      %p57 = pneg %p51
      %p58 = scmp.eq.s32.totalorder %s16, 1
      %p59 = por %p57, %p58
      %p60 = scmp.ne.s32.totalorder %s52, %s55
      %p61 = scmp.eq.s32.totalorder %s16, 0
      %p62 = por %p60, %p61
      %p63 = scmp.ne.s32.totalorder %s52, %s55
      %p64 = scmp.eq.s32.totalorder %s21, 1
      %p65 = por %p63, %p64
      %p66 = scmp.ne.s32.totalorder %s55, %s56
      %p67 = scmp.eq.s32.totalorder %s21, 0
      %p68 = por %p66, %p67
      %p69 = scmp.ne.s32.totalorder %s55, %s56
      %p70 = scmp.eq.s32.totalorder %s22, 1
      %p71 = por %p69, %p70
      %p73 = scmp.ne.s32.totalorder %s56, %s72
      %p74 = scmp.eq.s32.totalorder %s22, 0
      %p75 = por %p73, %p74
      %s77 = sadd.s32 %s76, 1
      %p80 = scmp.eq.s32.totalorder %s16, 1
      %p81 = scmp.ne.s32.totalorder %s76, %s78
      %p82 = scmp.eq.s32.totalorder %s16, 0
      %p83 = por %p81, %p82
      %p84 = scmp.ne.s32.totalorder %s76, %s78
      %p85 = scmp.eq.s32.totalorder %s21, 1
      %p86 = por %p84, %p85
      %p87 = scmp.ne.s32.totalorder %s78, %s79
      %p88 = scmp.eq.s32.totalorder %s21, 0
      %p89 = por %p87, %p88
      %p90 = scmp.ne.s32.totalorder %s78, %s79
      %p91 = scmp.eq.s32.totalorder %s22, 1
      %p92 = por %p90, %p91
      %p94 = scmp.ne.s32.totalorder %s79, %s93
      %p95 = scmp.eq.s32.totalorder %s22, 0
      %p96 = por %p94, %p95
      %s98 = sadd.s32 %s97, 1
      %p101 = scmp.eq.s32.totalorder %s16, 1
      %p102 = scmp.ne.s32.totalorder %s97, %s99
      %p103 = scmp.eq.s32.totalorder %s16, 0
      %p104 = por %p102, %p103
      %p105 = scmp.ne.s32.totalorder %s97, %s99
      %p106 = scmp.eq.s32.totalorder %s21, 1
      %p107 = por %p105, %p106
      %p108 = scmp.ne.s32.totalorder %s99, %s100
      %p109 = scmp.eq.s32.totalorder %s21, 0
      %p110 = por %p108, %p109
      %p111 = scmp.ne.s32.totalorder %s99, %s100
      %p112 = scmp.eq.s32.totalorder %s22, 1
      %p113 = por %p111, %p112
      %p115 = scmp.ne.s32.totalorder %s100, %s114
      %p116 = scmp.eq.s32.totalorder %s22, 0
      %p117 = por %p115, %p116
      %s119 = sadd.s32 %s118, 1
      %p122 = scmp.eq.s32.totalorder %s16, 1
      %p123 = scmp.ne.s32.totalorder %s118, %s120
      %p124 = scmp.eq.s32.totalorder %s16, 0
      %p125 = por %p123, %p124
      %p126 = scmp.ne.s32.totalorder %s118, %s120
      %p127 = scmp.eq.s32.totalorder %s21, 1
      %p128 = por %p126, %p127
      %p129 = scmp.ne.s32.totalorder %s120, %s121
      %p130 = scmp.eq.s32.totalorder %s21, 0
      %p131 = por %p129, %p130
      %p132 = scmp.ne.s32.totalorder %s120, %s121
      %p133 = scmp.eq.s32.totalorder %s22, 1
      %p134 = por %p132, %p133
      %p136 = scmp.ne.s32.totalorder %s121, %s135
      %p137 = scmp.eq.s32.totalorder %s22, 0
      %p138 = por %p136, %p137
      %s140 = sadd.s32 %s139, 1
      %p143 = scmp.eq.s32.totalorder %s16, 1
      %p144 = scmp.ne.s32.totalorder %s139, %s141
      %p145 = scmp.eq.s32.totalorder %s16, 0
      %p146 = por %p144, %p145
      %p147 = scmp.ne.s32.totalorder %s139, %s141
      %p148 = scmp.eq.s32.totalorder %s21, 1
      %p149 = por %p147, %p148
      %p150 = scmp.ne.s32.totalorder %s141, %s142
      %p151 = scmp.eq.s32.totalorder %s21, 0
      %p152 = por %p150, %p151
      %p153 = scmp.ne.s32.totalorder %s141, %s142
      %p154 = scmp.eq.s32.totalorder %s22, 1
      %p155 = por %p153, %p154
      %p157 = scmp.ne.s32.totalorder %s142, %s156
      %p158 = scmp.eq.s32.totalorder %s22, 0
      %p159 = por %p157, %p158
      %s161 = sadd.s32 %s160, 1
      %p164 = scmp.eq.s32.totalorder %s16, 1
      %p165 = scmp.ne.s32.totalorder %s160, %s162
      %p166 = scmp.eq.s32.totalorder %s16, 0
      %p167 = por %p165, %p166
      %p168 = scmp.ne.s32.totalorder %s160, %s162
      %p169 = scmp.eq.s32.totalorder %s21, 1
      %p170 = por %p168, %p169
      %p171 = scmp.ne.s32.totalorder %s162, %s163
      %p172 = scmp.eq.s32.totalorder %s21, 0
      %p173 = por %p171, %p172
      %p174 = scmp.ne.s32.totalorder %s162, %s163
      %p175 = scmp.eq.s32.totalorder %s22, 1
      %p176 = por %p174, %p175
      %p178 = scmp.ne.s32.totalorder %s163, %s177
      %p179 = scmp.eq.s32.totalorder %s22, 0
      %p180 = por %p178, %p179
      %s182 = sadd.s32 %s181, 1
      %p185 = scmp.eq.s32.totalorder %s16, 1
      %p186 = scmp.ne.s32.totalorder %s181, %s183
      %p187 = scmp.eq.s32.totalorder %s16, 0
      %p188 = por %p186, %p187
      %p189 = scmp.ne.s32.totalorder %s181, %s183
      %p190 = scmp.eq.s32.totalorder %s21, 1
      %p191 = por %p189, %p190
      %p192 = scmp.ne.s32.totalorder %s183, %s184
      %p193 = scmp.eq.s32.totalorder %s21, 0
      %p194 = por %p192, %p193
      %p195 = scmp.ne.s32.totalorder %s183, %s184
      %p196 = scmp.eq.s32.totalorder %s22, 1
      %p197 = por %p195, %p196
      %p199 = scmp.ne.s32.totalorder %s184, %s198
      %p200 = scmp.eq.s32.totalorder %s22, 0
      %p201 = por %p199, %p200
      %s203 = sadd.s32 %s202, 1
      %p206 = scmp.eq.s32.totalorder %s16, 1
      %p207 = scmp.ne.s32.totalorder %s202, %s204
      %p208 = scmp.eq.s32.totalorder %s16, 0
      %p209 = por %p207, %p208
      %p210 = scmp.ne.s32.totalorder %s202, %s204
      %p211 = scmp.eq.s32.totalorder %s21, 1
      %p212 = por %p210, %p211
      %p213 = scmp.ne.s32.totalorder %s204, %s205
      %p214 = scmp.eq.s32.totalorder %s21, 0
      %p215 = por %p213, %p214
      %p216 = scmp.ne.s32.totalorder %s204, %s205
      %p217 = scmp.eq.s32.totalorder %s22, 1
      %p218 = por %p216, %p217
      %p220 = scmp.ne.s32.totalorder %s205, %s219
      %p221 = scmp.eq.s32.totalorder %s22, 0
      %p222 = por %p220, %p221
      %s223 = ssub.s32 %s16, %s23
      %p224 = scmp.eq.s32.totalorder %s223, 0
      %s226 = sadd.s32 %s225, 1
      %s227 = scalar_select %p224, %s225, %s226
      %p230 = pneg %p224
      %p231 = scmp.eq.s32.totalorder %s16, 1
      %p232 = por %p230, %p231
      %p233 = scmp.ne.s32.totalorder %s225, %s228
      %p234 = scmp.eq.s32.totalorder %s16, 0
      %p235 = por %p233, %p234
      %p236 = scmp.ne.s32.totalorder %s225, %s228
      %p237 = scmp.eq.s32.totalorder %s21, 1
      %p238 = por %p236, %p237
      %p239 = scmp.ne.s32.totalorder %s228, %s229
      %p240 = scmp.eq.s32.totalorder %s21, 0
      %p241 = por %p239, %p240
      %p242 = scmp.ne.s32.totalorder %s228, %s229
      %p243 = scmp.eq.s32.totalorder %s22, 1
      %p244 = por %p242, %p243
      %p246 = scmp.ne.s32.totalorder %s229, %s245
      %p247 = scmp.eq.s32.totalorder %s22, 0
      %p248 = por %p246, %p247
      %p249 = scmp.le.s32.totalorder 1, %s16
      %p250 = scmp.lt.s32.totalorder %s16, 3
      %p251 = pnand %p249, %p250
      %p252 = pneg %p251
      // Predicated region
      $region9: #{tpu_custom_call.1} parent=5 // pred_check
        _
      $region10: #{tpu_custom_call.1} parent=5 // pred_check_branch
        %254 = sbr.rel (%p251) target = $region12
      $region11: #{tpu_custom_call.1} parent=5 // pred_region
        %s255 = ssub.s32 %s16, 1
        // Predicated region
        $region13: #{tpu_custom_call.1} parent=11 // pred_check
          %p256 = pneg %p89
        $region14: #{tpu_custom_call.1} parent=11 // pred_check_branch
          %258 = sbr.rel (%p256) target = $region16
        $region15: #{tpu_custom_call.1} parent=11 // pred_region
          %s260 = ssub.s32 256, 256
          %261 = vsyncadd [#allocation3], %s260
          %s262 = sshll.u32 [#allocation2], 4
          %s263 = int_to_ptr.vmem [resolvable:$true] %s262
          %268 = dma.hbm_to_vmem [thread:$0]  %s2, 256, %s263, [#allocation3], 64, 64, 4
        $region16: #{tpu_custom_call.1} parent=11 // pred_fallthru
          _
        // Predicated region
        $region17: #{tpu_custom_call.1} parent=11 // pred_check
          %p269 = pneg %p110
        $region18: #{tpu_custom_call.1} parent=11 // pred_check_branch
          %271 = sbr.rel (%p269) target = $region20
        $region19: #{tpu_custom_call.1} parent=11 // pred_region
          _
        $region20: #{tpu_custom_call.1} parent=11 // pred_fallthru
          _
        // Predicated region
        $region21: #{tpu_custom_call.1} parent=11 // pred_check
          %p272 = pneg %p131
        $region22: #{tpu_custom_call.1} parent=11 // pred_check_branch
          %274 = sbr.rel (%p272) target = $region24
        $region23: #{tpu_custom_call.1} parent=11 // pred_region
          _
        $region24: #{tpu_custom_call.1} parent=11 // pred_fallthru
          _
        // Predicated region
        $region25: #{tpu_custom_call.1} parent=11 // pred_check
          %p275 = pneg %p152
        $region26: #{tpu_custom_call.1} parent=11 // pred_check_branch
          %277 = sbr.rel (%p275) target = $region28
        $region27: #{tpu_custom_call.1} parent=11 // pred_region
          _
        $region28: #{tpu_custom_call.1} parent=11 // pred_fallthru
          _
        // Predicated region
        $region29: #{tpu_custom_call.1} parent=11 // pred_check
          %p278 = pneg %p173
        $region30: #{tpu_custom_call.1} parent=11 // pred_check_branch
          %280 = sbr.rel (%p278) target = $region32
        $region31: #{tpu_custom_call.1} parent=11 // pred_region
          _
        $region32: #{tpu_custom_call.1} parent=11 // pred_fallthru
          _
        // Predicated region
        $region33: #{tpu_custom_call.1} parent=11 // pred_check
          %p281 = pneg %p194
        $region34: #{tpu_custom_call.1} parent=11 // pred_check_branch
          %283 = sbr.rel (%p281) target = $region36
        $region35: #{tpu_custom_call.1} parent=11 // pred_region
          _
        $region36: #{tpu_custom_call.1} parent=11 // pred_fallthru
          _
        // Predicated region
        $region37: #{tpu_custom_call.1} parent=11 // pred_check
          %p284 = pneg %p215
        $region38: #{tpu_custom_call.1} parent=11 // pred_check_branch
          %286 = sbr.rel (%p284) target = $region40
        $region39: #{tpu_custom_call.1} parent=11 // pred_region
          _
        $region40: #{tpu_custom_call.1} parent=11 // pred_fallthru
          _
      $region12: #{tpu_custom_call.1} parent=5 // pred_fallthru
        _
      %p287 = scmp.lt.s32.totalorder %s16, 2
      // Predicated region
      $region41: #{tpu_custom_call.1} parent=5 // pred_check
        %p288 = pneg %p287
      $region42: #{tpu_custom_call.1} parent=5 // pred_check_branch
        %290 = sbr.rel (%p288) target = $region44
      $region43: #{tpu_custom_call.1} parent=5 // pred_region
        // Predicated region
        $region45: #{tpu_custom_call.1} parent=43 // pred_check
          %p291 = pneg %p36
        $region46: #{tpu_custom_call.1} parent=43 // pred_check_branch
          %293 = sbr.rel (%p291) target = $region48
        $region47: #{tpu_custom_call.1} parent=43 // pred_region
          %p294 = scmp.lt.s32.totalorder %s16, 1
          %s295 = scalar_select %p294, %s16, 1
          %s296 = smul.addr %s295, 8
          %s297 = scalar_lea.vmem %s0, %s296
        $region48: #{tpu_custom_call.1} parent=43 // pred_fallthru
          _
        // Predicated region
        $region49: #{tpu_custom_call.1} parent=43 // pred_check
          %p298 = pneg %p62
        $region50: #{tpu_custom_call.1} parent=43 // pred_check_branch
          %300 = sbr.rel (%p298) target = $region52
        $region51: #{tpu_custom_call.1} parent=43 // pred_region
          %p301 = scmp.lt.s32.totalorder %s16, 1
          %s302 = scalar_select %p301, %s16, 1
          %s303 = smul.addr %s302, 4
          %s304 = scalar_lea.vmem %s1, %s303
        $region52: #{tpu_custom_call.1} parent=43 // pred_fallthru
          _
      $region44: #{tpu_custom_call.1} parent=5 // pred_fallthru
        _
      %p305 = scmp.le.s32.totalorder 1, %s16
      %p306 = scmp.lt.s32.totalorder %s16, 3
      %p307 = pnand %p305, %p306
      %p308 = pneg %p307
      // Predicated region
      $region53: #{tpu_custom_call.1} parent=5 // pred_check
        _
      $region54: #{tpu_custom_call.1} parent=5 // pred_check_branch
        %310 = sbr.rel (%p307) target = $region56
      $region55: #{tpu_custom_call.1} parent=5 // pred_region
        %s311 = ssub.s32 %s16, 1
        // Predicated region
        $region57: #{tpu_custom_call.1} parent=55 // pred_check
          %p312 = pneg %p89
        $region58: #{tpu_custom_call.1} parent=55 // pred_check_branch
          %314 = sbr.rel (%p312) target = $region60
        $region59: #{tpu_custom_call.1} parent=55 // pred_region
          %315 = dma.done [#allocation3], 256
        $region60: #{tpu_custom_call.1} parent=55 // pred_fallthru
          _
        %p316 = scmp.lt.s32.totalorder %s21, 1
        %s317 = scalar_select %p316, %s21, 1
        %s318 = smul.addr %s317, 8
        %s319 = scalar_lea.vmem %s0, %s318
        %p320 = pneg %p42
        %p321 = pneg %p39
        %p322 = scmp.lt.s32.totalorder %s21, 1
        %s323 = scalar_select %p322, %s21, 1
        %s324 = smul.addr %s323, 4
        %s325 = scalar_lea.vmem %s1, %s324
        %p326 = pneg %p68
        %p327 = pneg %p65
        %p328 = pneg %p89
        %p329 = pneg %p86
        %p330 = pneg %p110
        %p331 = pneg %p107
        %p332 = pneg %p131
        %p333 = pneg %p128
        %p334 = pneg %p152
        %p335 = pneg %p149
        %p336 = pneg %p173
        %p337 = pneg %p170
        %p338 = pneg %p194
        %p339 = pneg %p191
        %p340 = pneg %p215
        %p341 = pneg %p212
        %p342 = pneg %p241
        %p343 = pneg %p238
        %p344 = scmp.lt.s32.totalorder %s21, 1
        %s345 = scalar_select %p344, %s21, 1
        %s346 = smul.addr %s345, 8
        %s347 = scalar_lea.vmem %s9, %s346
        %p348 = scmp.lt.s32.totalorder %s21, 1
        %s349 = scalar_select %p348, %s21, 1
        %s350 = smul.addr %s349, 8
        %s351 = scalar_lea.vmem %s0, %s350
        %p352 = scmp.lt.s32.totalorder %s21, 1
        %s353 = scalar_select %p352, %s21, 1
        %s354 = smul.addr %s353, 4
        %s355 = scalar_lea.vmem %s1, %s354
        %p356 = scmp.lt.s32.totalorder %s21, 1
        %s357 = scalar_select %p356, %s21, 1
        %s358 = smul.addr %s357, 8
        %s359 = scalar_lea.vmem %s9, %s358
        %v361 = vld [vmem:[%s351] sm:$0xff]
        %v362 = vpack.c.bf16 %v361, %v361
        %v363 = vld [vmem:[#allocation2] sm:$0xf]
        %v364 = vld [vmem:[#allocation2 + $0x4] sm:$0xf]
        %v365 = vld [vmem:[#allocation2 + $0x8] sm:$0xf]
        %v366 = vld [vmem:[#allocation2 + $0xc] sm:$0x7]
        %v367 = vld [vmem:[%s355] sm:$0xf]
        %v368 = vld [vmem:[%s3] sm:$0xf]
        %vm369 = vcmask 64512
        %v371 = vsel %vm369, %v367, 0
        %vm373 = vcmask 1043456
        %v375 = vsel %vm373, %v368, 0
        %377 = vmatprep.subr.bf16.mxu0 0
        %378 = vmatpush1.bf16.msra.mxu0 0
        %379 = vmatprep.subr.bf16.mxu0 0
        %380 = vmatpush1.bf16.msra.mxu0 0
        %381 = vmatprep.subr.bf16.mxu0 0
        %382 = vmatpush1.bf16.msra.mxu0 0
        %383 = vmatprep.subr.bf16.mxu0 0
        %384 = vmatpush1.bf16.msra.mxu0 0
        %385 = vmatprep.subr.bf16.mxu0 0
        %386 = vmatpush1.bf16.msra.mxu0 0
        %387 = vmatprep.subr.bf16.mxu0 0
        %388 = vmatpush1.bf16.msra.mxu0 0
        %389 = vmatprep.subr.bf16.mxu0 0
        %390 = vmatpush1.bf16.msra.mxu0 0
        %391 = vmatprep.subr.bf16.mxu0 0
        %392 = vmatpush1.bf16.msra.mxu0 %v375
        %393 = vmatprep.subr.bf16.mxu0 0
        %394 = vmatpush2.bf16.msra.mxu0 0
        %395 = vmatprep.subr.bf16.mxu0 0
        %396 = vmatpush2.bf16.msra.mxu0 0
        %397 = vmatprep.subr.bf16.mxu0 0
        %398 = vmatpush2.bf16.msra.mxu0 0
        %399 = vmatprep.subr.bf16.mxu0 0
        %400 = vmatpush2.bf16.msra.mxu0 0
        %401 = vmatprep.subr.bf16.mxu0 0
        %402 = vmatpush2.bf16.msra.mxu0 0
        %403 = vmatprep.subr.bf16.mxu0 0
        %404 = vmatpush2.bf16.msra.mxu0 0
        %405 = vmatprep.subr.bf16.mxu0 0
        %406 = vmatpush2.bf16.msra.mxu0 0
        %407 = vmatprep.subr.bf16.mxu0 0
        %408 = vmatpush2.bf16.msra.mxu0 0
        %409 = vmatprep.mubr.bf16.mxu0 0
        %410 = vmatmul.mubr.bf16.gmra.mxu0 %v371
        %v411 = vpop.f32.mrf.mxu0
        %v412 = vadd.f32 0.0, %v411
        %v413 = vpop.f32.mrf.mxu0
        %v414 = vpop.f32.mrf.mxu0
        %v415 = vpop.f32.mrf.mxu0
        %416 = vdwg.mxu0
        %v421 = vunpack.c.l.b16 %v363
        %v422 = vunpack.c.l.b16 %v364
        %v423 = vunpack.c.l.b16 %v365
        %v424 = vunpack.c.l.b16 %v366
        %v425 = vpack.c.b16 %v422, %v421
        %v426 = vpack.c.b16 %v424, %v423
        %vm428 = vcmask 244736
        %v430 = vsel %vm428, %v362, 0
        %vm432 = vcmask 1046528
        %v434 = vsel %vm432, %v426, 0
        %436 = vmatprep.subr.bf16.mxu0 0
        %437 = vmatpush1.bf16.msra.mxu0 0
        %438 = vmatprep.subr.bf16.mxu0 0
        %439 = vmatpush1.bf16.msra.mxu0 0
        %440 = vmatprep.subr.bf16.mxu0 0
        %441 = vmatpush1.bf16.msra.mxu0 0
        %442 = vmatprep.subr.bf16.mxu0 0
        %443 = vmatpush1.bf16.msra.mxu0 0
        %444 = vmatprep.subr.bf16.mxu0 0
        %445 = vmatpush1.bf16.msra.mxu0 0
        %446 = vmatprep.subr.bf16.mxu0 0
        %447 = vmatpush1.bf16.msra.mxu0 0
        %448 = vmatprep.subr.bf16.mxu0 0
        %449 = vmatpush1.bf16.msra.mxu0 %v434
        %450 = vmatprep.subr.bf16.mxu0 0
        %451 = vmatpush1.bf16.msra.mxu0 %v425
        %452 = vmatprep.subr.bf16.mxu0 0
        %453 = vmatpush2.bf16.msra.mxu0 0
        %454 = vmatprep.subr.bf16.mxu0 0
        %455 = vmatpush2.bf16.msra.mxu0 0
        %456 = vmatprep.subr.bf16.mxu0 0
        %457 = vmatpush2.bf16.msra.mxu0 0
        %458 = vmatprep.subr.bf16.mxu0 0
        %459 = vmatpush2.bf16.msra.mxu0 0
        %460 = vmatprep.subr.bf16.mxu0 0
        %461 = vmatpush2.bf16.msra.mxu0 0
        %462 = vmatprep.subr.bf16.mxu0 0
        %463 = vmatpush2.bf16.msra.mxu0 0
        %464 = vmatprep.subr.bf16.mxu0 0
        %465 = vmatpush2.bf16.msra.mxu0 0
        %466 = vmatprep.subr.bf16.mxu0 0
        %467 = vmatpush2.bf16.msra.mxu0 0
        %468 = vmatprep.mubr.bf16.mxu0 0
        %469 = vmatmul.mubr.bf16.gmra.mxu0 %v430
        %v470 = vpop.f32.mrf.mxu0
        %v471 = vadd.f32 %v412, %v470
        %v472 = vpop.f32.mrf.mxu0
        %v473 = vpop.f32.mrf.mxu0
        %v474 = vpop.f32.mrf.mxu0
        %475 = vdwg.mxu0
        %v476 = vld [vmem:[%s4] sm:$0x1]
        %v478 = vlaneseq
        %v479 = vshrl.u32 %v478, 7
        %v480 = vsub.s32 0, %v479
        %v481 = vrot.slane %v476, %v480
        %v483 = vadd.f32 %v471, %v481
        %v484 = vmul.f32 %v483, 0.2
        %v485 = vmax.f32 %v483, %v484
        %v486 = vpack.c.bf16 %v485, %v485
        %v487 = vld [vmem:[%s5] sm:$0xf]
        %v488 = vld [vmem:[%s5 + $0x4] sm:$0xf]
        %v489 = vld [vmem:[%s5 + $0x8] sm:$0xf]
        %v490 = vld [vmem:[%s5 + $0xc] sm:$0xf]
        %v491 = vld [vmem:[%s5 + $0x10] sm:$0xf]
        %v492 = vld [vmem:[%s5 + $0x14] sm:$0xf]
        %v493 = vld [vmem:[%s5 + $0x18] sm:$0xf]
        %v494 = vld [vmem:[%s5 + $0x1c] sm:$0xf]
        %v495 = vld [vmem:[%s5 + $0x20] sm:$0xf]
        %v496 = vld [vmem:[%s5 + $0x24] sm:$0xf]
        %v497 = vld [vmem:[%s5 + $0x28] sm:$0xf]
        %v498 = vld [vmem:[%s5 + $0x2c] sm:$0xf]
        %v499 = vld [vmem:[%s5 + $0x30] sm:$0xf]
        %v500 = vld [vmem:[%s5 + $0x34] sm:$0xf]
        %v501 = vld [vmem:[%s5 + $0x38] sm:$0xf]
        %v502 = vld [vmem:[%s5 + $0x3c] sm:$0xf]
        %v503 = vld [vmem:[%s6] sm:$0x1]
        %v505 = vlaneseq
        %v506 = vshrl.u32 %v505, 7
        %v507 = vsub.s32 0, %v506
        %v508 = vrot.slane %v503, %v507
        %v526 = vunpack.c.l.b16 %v487
        %v527 = vunpack.c.l.b16 %v488
        %v528 = vunpack.c.l.b16 %v489
        %v529 = vunpack.c.l.b16 %v490
        %v530 = vunpack.c.l.b16 %v491
        %v531 = vunpack.c.l.b16 %v492
        %v532 = vunpack.c.l.b16 %v493
        %v533 = vunpack.c.l.b16 %v494
        %v534 = vunpack.c.l.b16 %v495
        %v535 = vunpack.c.l.b16 %v496
        %v536 = vunpack.c.l.b16 %v497
        %v537 = vunpack.c.l.b16 %v498
        %v538 = vunpack.c.l.b16 %v499
        %v539 = vunpack.c.l.b16 %v500
        %v540 = vunpack.c.l.b16 %v501
        %v541 = vunpack.c.l.b16 %v502
        %v542 = vpack.c.b16 %v527, %v526
        %v543 = vpack.c.b16 %v529, %v528
        %v544 = vpack.c.b16 %v531, %v530
        %v545 = vpack.c.b16 %v533, %v532
        %v546 = vpack.c.b16 %v535, %v534
        %v547 = vpack.c.b16 %v537, %v536
        %v548 = vpack.c.b16 %v539, %v538
        %v549 = vpack.c.b16 %v541, %v540
        %558 = vmatprep.subr.bf16.mxu0 0
        %559 = vmatpush1.bf16.msra.mxu0 %v549
        %560 = vmatprep.subr.bf16.mxu0 0
        %561 = vmatpush1.bf16.msra.mxu0 %v548
        %562 = vmatprep.subr.bf16.mxu0 0
        %563 = vmatpush1.bf16.msra.mxu0 %v547
        %564 = vmatprep.subr.bf16.mxu0 0
        %565 = vmatpush1.bf16.msra.mxu0 %v546
        %566 = vmatprep.subr.bf16.mxu0 0
        %567 = vmatpush1.bf16.msra.mxu0 %v545
        %568 = vmatprep.subr.bf16.mxu0 0
        %569 = vmatpush1.bf16.msra.mxu0 %v544
        %570 = vmatprep.subr.bf16.mxu0 0
        %571 = vmatpush1.bf16.msra.mxu0 %v543
        %572 = vmatprep.subr.bf16.mxu0 0
        %573 = vmatpush1.bf16.msra.mxu0 %v542
        %574 = vmatprep.subr.bf16.mxu0 0
        %575 = vmatpush2.bf16.msra.mxu0 0
        %576 = vmatprep.subr.bf16.mxu0 0
        %577 = vmatpush2.bf16.msra.mxu0 0
        %578 = vmatprep.subr.bf16.mxu0 0
        %579 = vmatpush2.bf16.msra.mxu0 0
        %580 = vmatprep.subr.bf16.mxu0 0
        %581 = vmatpush2.bf16.msra.mxu0 0
        %582 = vmatprep.subr.bf16.mxu0 0
        %583 = vmatpush2.bf16.msra.mxu0 0
        %584 = vmatprep.subr.bf16.mxu0 0
        %585 = vmatpush2.bf16.msra.mxu0 0
        %586 = vmatprep.subr.bf16.mxu0 0
        %587 = vmatpush2.bf16.msra.mxu0 0
        %588 = vmatprep.subr.bf16.mxu0 0
        %589 = vmatpush2.bf16.msra.mxu0 0
        %590 = vmatprep.mubr.bf16.mxu0 0
        %591 = vmatmul.mubr.bf16.gmra.mxu0 %v486
        %v592 = vpop.f32.mrf.mxu0
        %v593 = vadd.f32 %v508, %v592
        %v594 = vpop.f32.mrf.mxu0
        %v595 = vpop.f32.mrf.mxu0
        %v596 = vpop.f32.mrf.mxu0
        %597 = vdwg.mxu0
        %v598 = vmul.f32 %v593, 0.2
        %v599 = vmax.f32 %v593, %v598
        %v600 = vpack.c.bf16 %v599, %v599
        %v601 = vld [vmem:[%s7] sm:$0xf]
        %v602 = vld [vmem:[%s7 + $0x4] sm:$0xf]
        %v603 = vld [vmem:[%s7 + $0x8] sm:$0xf]
        %v604 = vld [vmem:[%s7 + $0xc] sm:$0xf]
        %v605 = vld [vmem:[%s7 + $0x10] sm:$0xf]
        %v606 = vld [vmem:[%s7 + $0x14] sm:$0xf]
        %v607 = vld [vmem:[%s7 + $0x18] sm:$0xf]
        %v608 = vld [vmem:[%s7 + $0x1c] sm:$0xf]
        %v609 = vld [vmem:[%s7 + $0x20] sm:$0xf]
        %v610 = vld [vmem:[%s7 + $0x24] sm:$0xf]
        %v611 = vld [vmem:[%s7 + $0x28] sm:$0xf]
        %v612 = vld [vmem:[%s7 + $0x2c] sm:$0xf]
        %v613 = vld [vmem:[%s7 + $0x30] sm:$0xf]
        %v614 = vld [vmem:[%s7 + $0x34] sm:$0xf]
        %v615 = vld [vmem:[%s7 + $0x38] sm:$0xf]
        %v616 = vld [vmem:[%s7 + $0x3c] sm:$0xf]
        %v617 = vld [vmem:[%s8] sm:$0x1]
        %v619 = vlaneseq
        %v620 = vshrl.u32 %v619, 7
        %v621 = vsub.s32 0, %v620
        %v622 = vrot.slane %v617, %v621
        %v640 = vunpack.c.l.b16 %v601
        %v641 = vunpack.c.l.b16 %v602
        %v642 = vunpack.c.l.b16 %v603
        %v643 = vunpack.c.l.b16 %v604
        %v644 = vunpack.c.l.b16 %v605
        %v645 = vunpack.c.l.b16 %v606
        %v646 = vunpack.c.l.b16 %v607
        %v647 = vunpack.c.l.b16 %v608
        %v648 = vunpack.c.l.b16 %v609
        %v649 = vunpack.c.l.b16 %v610
        %v650 = vunpack.c.l.b16 %v611
        %v651 = vunpack.c.l.b16 %v612
        %v652 = vunpack.c.l.b16 %v613
        %v653 = vunpack.c.l.b16 %v614
        %v654 = vunpack.c.l.b16 %v615
        %v655 = vunpack.c.l.b16 %v616
        %v656 = vpack.c.b16 %v641, %v640
        %v657 = vpack.c.b16 %v643, %v642
        %v658 = vpack.c.b16 %v645, %v644
        %v659 = vpack.c.b16 %v647, %v646
        %v660 = vpack.c.b16 %v649, %v648
        %v661 = vpack.c.b16 %v651, %v650
        %v662 = vpack.c.b16 %v653, %v652
        %v663 = vpack.c.b16 %v655, %v654
        %672 = vmatprep.subr.bf16.mxu0 0
        %673 = vmatpush1.bf16.msra.mxu0 %v663
        %674 = vmatprep.subr.bf16.mxu0 0
        %675 = vmatpush1.bf16.msra.mxu0 %v662
        %676 = vmatprep.subr.bf16.mxu0 0
        %677 = vmatpush1.bf16.msra.mxu0 %v661
        %678 = vmatprep.subr.bf16.mxu0 0
        %679 = vmatpush1.bf16.msra.mxu0 %v660
        %680 = vmatprep.subr.bf16.mxu0 0
        %681 = vmatpush1.bf16.msra.mxu0 %v659
        %682 = vmatprep.subr.bf16.mxu0 0
        %683 = vmatpush1.bf16.msra.mxu0 %v658
        %684 = vmatprep.subr.bf16.mxu0 0
        %685 = vmatpush1.bf16.msra.mxu0 %v657
        %686 = vmatprep.subr.bf16.mxu0 0
        %687 = vmatpush1.bf16.msra.mxu0 %v656
        %688 = vmatprep.subr.bf16.mxu0 0
        %689 = vmatpush2.bf16.msra.mxu0 0
        %690 = vmatprep.subr.bf16.mxu0 0
        %691 = vmatpush2.bf16.msra.mxu0 0
        %692 = vmatprep.subr.bf16.mxu0 0
        %693 = vmatpush2.bf16.msra.mxu0 0
        %694 = vmatprep.subr.bf16.mxu0 0
        %695 = vmatpush2.bf16.msra.mxu0 0
        %696 = vmatprep.subr.bf16.mxu0 0
        %697 = vmatpush2.bf16.msra.mxu0 0
        %698 = vmatprep.subr.bf16.mxu0 0
        %699 = vmatpush2.bf16.msra.mxu0 0
        %700 = vmatprep.subr.bf16.mxu0 0
        %701 = vmatpush2.bf16.msra.mxu0 0
        %702 = vmatprep.subr.bf16.mxu0 0
        %703 = vmatpush2.bf16.msra.mxu0 0
        %704 = vmatprep.mubr.bf16.mxu0 0
        %705 = vmatmul.mubr.bf16.gmra.mxu0 %v600
        %v706 = vpop.f32.mrf.mxu0
        %v707 = vadd.f32 %v622, %v706
        %v708 = vpop.f32.mrf.mxu0
        %v709 = vpop.f32.mrf.mxu0
        %v710 = vpop.f32.mrf.mxu0
        %711 = vdwg.mxu0
        %712 = vst.msk [vmem:[%s359] sm:$0xff] %vm369, %v707
        %p713 = scmp.lt.s32.totalorder %s21, 1
        %s714 = scalar_select %p713, %s21, 1
        %s715 = smul.addr %s714, 8
        %s716 = scalar_lea.vmem %s9, %s715
        // Predicated region
        $region61: #{tpu_custom_call.1} parent=55 // pred_check
          %p717 = pneg %p238
        $region62: #{tpu_custom_call.1} parent=55 // pred_check_branch
          %719 = sbr.rel (%p717) target = $region64
        $region63: #{tpu_custom_call.1} parent=55 // pred_region
          _
        $region64: #{tpu_custom_call.1} parent=55 // pred_fallthru
          _
      $region56: #{tpu_custom_call.1} parent=5 // pred_fallthru
        _
      %p720 = scmp.le.s32.totalorder 2, %s16
      // Predicated region
      $region65: #{tpu_custom_call.1} parent=5 // pred_check
        %p721 = pneg %p720
      $region66: #{tpu_custom_call.1} parent=5 // pred_check_branch
        %723 = sbr.rel (%p721) target = $region68
      $region67: #{tpu_custom_call.1} parent=5 // pred_region
        %s724 = ssub.s32 %s16, 2
        // Predicated region
        $region69: #{tpu_custom_call.1} parent=67 // pred_check
          %p725 = pneg %p244
        $region70: #{tpu_custom_call.1} parent=67 // pred_check_branch
          %727 = sbr.rel (%p725) target = $region72
        $region71: #{tpu_custom_call.1} parent=67 // pred_region
          %p728 = scmp.lt.s32.totalorder %s22, 1
          %s729 = scalar_select %p728, %s22, 1
          %s730 = smul.addr %s729, 8
          %s731 = scalar_lea.vmem %s9, %s730
        $region72: #{tpu_custom_call.1} parent=67 // pred_fallthru
          _
      $region68: #{tpu_custom_call.1} parent=5 // pred_fallthru
        _
    $region6: #{tpu_custom_call.1} parent=1 // loop_footer
      %s20 = sadd.s32 1, %s16
    $region7: #{tpu_custom_call.1} parent=1 // loop_footer_branch
      %15 = sbr.rel target = $region3
    $region8: #{tpu_custom_call.1} parent=1 // loop_exit
      _
    %732 = vsyncpa [#allocation3], 1
    %s733 = scalar_lea.sflag [#allocation3], 1
    %734 = vsyncpa %s733, 1

</llo_original>
